<compile_context>
chip_gen: v7x
topology: tpu7x:2x2x1
jax: 0.10.0
libtpu: 0.0.40
codegen_flags: <defaults>
</compile_context>

<pallas_src>
import jax
import jax.numpy as jnp
from jax.experimental import pallas as pl
from jax.experimental.pallas import tpu as pltpu


def _ce2d_kernel(x_ref, t_ref, out_ref, acc_ref):
    s = pl.program_id(2)

    @pl.when(s == 0)
    def _init():
        acc_ref[...] = jnp.zeros_like(acc_ref)

    x = x_ref[0].astype(jnp.float32)            # (C, tile_p)
    t = t_ref[0]                                # (1, tile_p) int32

    # Stable log-sum-exp over the channel (sublane) axis.
    m = jnp.max(x, axis=0, keepdims=True)                                  # (1, tile_p)
    lse = m + jnp.log(jnp.sum(jnp.exp(x - m), axis=0, keepdims=True))      # (1, tile_p)

    # Target logit per pixel via iota-compare (exactly one hit per column).
    # Hoisted: only a (C, 1) iota is materialized; the == compare broadcasts
    # across lanes instead of building a full (C, tile_p) iota every step.
    class_ids = jax.lax.broadcasted_iota(jnp.int32, (x.shape[0], 1), 0)    # (C, 1)
    picked = jnp.sum(jnp.where(class_ids == t, x, 0.0), axis=0, keepdims=True)

    # Lane-wise accumulation (VPU only); cross-lane reduce deferred to epilogue.
    acc_ref[...] += lse - picked

    @pl.when(s == pl.num_programs(2) - 1)
    def _finalize():
        total = jnp.sum(acc_ref[...])                                      # scalar f32
        sub = jax.lax.broadcasted_iota(jnp.int32, (8, 128), 0)
        lane = jax.lax.broadcasted_iota(jnp.int32, (8, 128), 1)
        # Lane-aligned per-(image, group) partial: total at [0, 0], zeros elsewhere.
        out_ref[0, 0] = jnp.where((sub == 0) & (lane == 0), total, 0.0)


def _sublane_tile(itemsize):
    # Packed-dtype sublane tiling: f32 -> 8, bf16/f16 -> 16, int8/fp8 -> 32.
    return {4: 8, 2: 16, 1: 32}.get(itemsize, 8)


def _pick_tile_p(C, HW, x_itemsize, *, vmem_budget_bytes=14 * 1024 * 1024, cap=32768):
    """Largest 128-aligned divisor of HW fitting a double-buffered VMEM budget."""
    sub = _sublane_tile(x_itemsize)
    c_pad = -(-C // sub) * sub                  # dtype-correct sublane padding of channels
    per_lane = 2 * c_pad * x_itemsize           # double-buffered logits tile
    per_lane += 2 * 8 * 4                       # double-buffered int32 targets (8-sublane pad)
    per_lane += 8 * 4                           # f32 lane-wise accumulator (8-sublane pad)
    limit = max(128, (vmem_budget_bytes // per_lane) // 128 * 128)
    limit = min(cap, limit)
    if HW < 128:
        return HW                               # full-row block (== array dim, allowed)
    t = min(limit, (HW // 128) * 128)
    while t >= 128:
        if HW % t == 0:
            return t
        t -= 128
    return HW                                   # no 128-aligned divisor: one full block


def _pick_outer_split(num_tiles):
    """Split the pixel-tile axis into G parallel groups (megacore sharding on v7x)."""
    for g in (8, 4, 2):
        if num_tiles % g == 0:
            return g
    return 1


def cross_entropy_loss_2d(inputs_nchw, targets_nhw, *, tile_p=None):
    """inputs_nchw: (N, C, H, W) float; targets_nhw: (N, H, W) int. Returns scalar f32."""
    N, C, H, W = inputs_nchw.shape
    HW = H * W
    P = N * HW

    if tile_p is None:
        tile_p = _pick_tile_p(C, HW, inputs_nchw.dtype.itemsize)
    assert HW % tile_p == 0, "pixel count per image must be a multiple of tile_p"

    num_tiles = HW // tile_p
    G = _pick_outer_split(num_tiles)            # parallel pixel-tile groups
    S = num_tiles // G                          # reduction steps per group

    # Free reshapes of the contiguous NCHW layout (lane axis = H*W, already dense).
    x = inputs_nchw.reshape(N, C, HW)
    t = targets_nhw.reshape(N, 1, HW).astype(jnp.int32)

    grid = (N, G, S)

    partial = pl.pallas_call(
        _ce2d_kernel,
        out_shape=jax.ShapeDtypeStruct((N, G, 8, 128), jnp.float32),
        grid_spec=pltpu.PrefetchScalarGridSpec(
            num_scalar_prefetch=0,
            grid=grid,
            in_specs=[
                pl.BlockSpec((1, C, tile_p), lambda n, g, s: (n, 0, g * S + s)),
                pl.BlockSpec((1, 1, tile_p), lambda n, g, s: (n, 0, g * S + s)),
            ],
            out_specs=pl.BlockSpec((1, 1, 8, 128), lambda n, g, s: (n, g, 0, 0)),
            scratch_shapes=[pltpu.VMEM((1, tile_p), jnp.float32)],
        ),
        compiler_params=pltpu.CompilerParams(
            dimension_semantics=("parallel", "parallel", "arbitrary"),
            vmem_limit_bytes=32 * 1024 * 1024,
        ),
    )(x, t)

    # size_average=True -> mean over all N*H*W pixels.
    return jnp.sum(partial) / jnp.float32(P)


def _reference(inputs_nchw, targets_nhw):
    # Pure-JAX reference: F.log_softmax(dim=1) + NLLLoss2d(size_average=True).
    logp = jax.nn.log_softmax(inputs_nchw.astype(jnp.float32), axis=1)  # (N,C,H,W)
    picked = jnp.take_along_axis(
        logp, targets_nhw[:, None, :, :].astype(jnp.int32), axis=1
    )[:, 0]  # (N,H,W)
    return -jnp.mean(picked)


if __name__ == "__main__":
    key = jax.random.PRNGKey(0)
    k1, k2 = jax.random.split(key)

    N, C, H, W = 2, 4, 16, 16
    inputs = jax.random.normal(k1, (N, C, H, W), dtype=jnp.float32)
    targets = jax.random.randint(k2, (N, H, W), 0, C, dtype=jnp.int32)

    loss = cross_entropy_loss_2d(inputs, targets)
    loss = jax.block_until_ready(loss)

    ref = _reference(inputs, targets)
    assert jnp.allclose(loss, ref, rtol=1e-5, atol=1e-5), (loss, ref)

    print("KERNEL_OK")
</pallas_src>

<mosaic_0001>
module attributes {stable_mosaic.version = 11 : i64} {
  func.func @_ce2d_kernel(%arg0: i32, %arg1: i32, %arg2: i32, %arg3: memref<1x4x256xf32, #tpu.memory_space<vmem>>, %arg4: memref<1x1x256xi32, #tpu.memory_space<vmem>>, %arg5: memref<1x1x8x128xf32, #tpu.memory_space<vmem>>, %arg6: memref<1x256xf32, #tpu.memory_space<vmem>>) attributes {dimension_semantics = [#tpu.dimension_semantics<parallel>, #tpu.dimension_semantics<parallel>, #tpu.dimension_semantics<arbitrary>], iteration_bounds = array<i64: 2, 1, 1>, scalar_prefetch = 0 : i64, scratch_operands = 1 : i64, tpu.core_type = #tpu.core_type<tc>, window_params = [{transform_indices = @transform_0, window_bounds = array<i64: 1, 4, 256>}, {transform_indices = @transform_1, window_bounds = array<i64: 1, 1, 256>}, {transform_indices = @transform_2, window_bounds = array<i64: 1, 1, 8, 128>}]} {
    %c0_i32 = arith.constant 0 : i32
    %0 = arith.cmpi eq, %arg2, %c0_i32 : i32
    %1 = arith.extui %0 : i1 to i32
    %c0_i32_0 = arith.constant 0 : i32
    %2 = arith.cmpi ne, %1, %c0_i32_0 : i32
    scf.if %2 {
      %cst_15 = arith.constant 0.000000e+00 : f32
      %31 = vector.broadcast %cst_15 : f32 to vector<1x256xf32>
      %c0_16 = arith.constant 0 : index
      %c0_17 = arith.constant 0 : index
      %32 = vector.load %arg6[%c0_16, %c0_17] : memref<1x256xf32, #tpu.memory_space<vmem>>, vector<1x256xf32>
      tpu.vector_store %arg6[%c0_16, %c0_17], %31 {strides = array<i32>} : memref<1x256xf32, #tpu.memory_space<vmem>>, vector<1x256xf32>,
    } else {
    }
    %c0 = arith.constant 0 : index
    %c0_1 = arith.constant 0 : index
    %c0_2 = arith.constant 0 : index
    %3 = vector.load %arg3[%c0, %c0_1, %c0_2] : memref<1x4x256xf32, #tpu.memory_space<vmem>>, vector<1x4x256xf32>
    %4 = vector.shape_cast %3 : vector<1x4x256xf32> to vector<4x256xf32>
    %c0_3 = arith.constant 0 : index
    %c0_4 = arith.constant 0 : index
    %c0_5 = arith.constant 0 : index
    %5 = vector.load %arg4[%c0_3, %c0_4, %c0_5] : memref<1x1x256xi32, #tpu.memory_space<vmem>>, vector<1x1x256xi32>
    %6 = vector.shape_cast %5 : vector<1x1x256xi32> to vector<1x256xi32>
    %cst = arith.constant dense<0xFF800000> : vector<256xf32>
    %7 = vector.multi_reduction <maximumf>, %4, %cst [0] : vector<4x256xf32> to vector<256xf32>
    %8 = vector.shape_cast %7 : vector<256xf32> to vector<1x256xf32>
    %9 = vector.broadcast %8 : vector<1x256xf32> to vector<4x256xf32>
    %10 = arith.subf %4, %9 : vector<4x256xf32>
    %11 = math.exp %10 : vector<4x256xf32>
    %cst_6 = arith.constant dense<0.000000e+00> : vector<256xf32>
    %12 = vector.multi_reduction <add>, %11, %cst_6 [0] : vector<4x256xf32> to vector<256xf32>
    %13 = vector.shape_cast %12 : vector<256xf32> to vector<1x256xf32>
    %14 = math.log %13 : vector<1x256xf32>
    %15 = arith.addf %8, %14 : vector<1x256xf32>
    %16 = tpu.iota {dimensions = array<i32: 0>} : vector<4x1xi32>
    %17 = vector.broadcast %16 : vector<4x1xi32> to vector<4x256xi32>
    %18 = vector.broadcast %6 : vector<1x256xi32> to vector<4x256xi32>
    %19 = arith.cmpi eq, %17, %18 : vector<4x256xi32>
    %cst_7 = arith.constant 0.000000e+00 : f32
    %20 = vector.broadcast %cst_7 : f32 to vector<4x256xf32>
    %21 = arith.select %19, %4, %20 : vector<4x256xi1>, vector<4x256xf32>
    %cst_8 = arith.constant dense<0.000000e+00> : vector<256xf32>
    %22 = vector.multi_reduction <add>, %21, %cst_8 [0] : vector<4x256xf32> to vector<256xf32>
    %23 = vector.shape_cast %22 : vector<256xf32> to vector<1x256xf32>
    %c0_9 = arith.constant 0 : index
    %c0_10 = arith.constant 0 : index
    %24 = vector.load %arg6[%c0_9, %c0_10] : memref<1x256xf32, #tpu.memory_space<vmem>>, vector<1x256xf32>
    %25 = arith.subf %15, %23 : vector<1x256xf32>
    %26 = arith.addf %24, %25 : vector<1x256xf32>
    %c0_11 = arith.constant 0 : index
    %c0_12 = arith.constant 0 : index
    %27 = vector.load %arg6[%c0_11, %c0_12] : memref<1x256xf32, #tpu.memory_space<vmem>>, vector<1x256xf32>
    tpu.vector_store %arg6[%c0_11, %c0_12], %26 {strides = array<i32>} : memref<1x256xf32, #tpu.memory_space<vmem>>, vector<1x256xf32>,
    %c0_i32_13 = arith.constant 0 : i32
    %28 = arith.cmpi eq, %arg2, %c0_i32_13 : i32
    %29 = arith.extui %28 : i1 to i32
    %c0_i32_14 = arith.constant 0 : i32
    %30 = arith.cmpi ne, %29, %c0_i32_14 : i32
    scf.if %30 {
      %c0_15 = arith.constant 0 : index
      %c0_16 = arith.constant 0 : index
      %31 = vector.load %arg6[%c0_15, %c0_16] : memref<1x256xf32, #tpu.memory_space<vmem>>, vector<1x256xf32>
      %32 = vector.shape_cast %31 : vector<1x256xf32> to vector<1x1x256xf32>
      %cst_17 = arith.constant dense<0.000000e+00> : vector<1xf32>
      %33 = vector.multi_reduction <add>, %32, %cst_17 [1, 2] : vector<1x1x256xf32> to vector<1xf32>
      %34 = vector.shape_cast %33 : vector<1xf32> to vector<1x1x1xf32>
      %35 = vector.extract %34[0, 0, 0] : f32 from vector<1x1x1xf32>
      %36 = tpu.iota {dimensions = array<i32: 0>} : vector<8x128xi32>
      %37 = tpu.iota {dimensions = array<i32: 1>} : vector<8x128xi32>
      %c0_i32_18 = arith.constant 0 : i32
      %38 = vector.broadcast %c0_i32_18 : i32 to vector<8x128xi32>
      %39 = arith.cmpi eq, %36, %38 : vector<8x128xi32>
      %c0_i32_19 = arith.constant 0 : i32
      %40 = vector.broadcast %c0_i32_19 : i32 to vector<8x128xi32>
      %41 = arith.cmpi eq, %37, %40 : vector<8x128xi32>
      %42 = arith.andi %39, %41 : vector<8x128xi1>
      %cst_20 = arith.constant 0.000000e+00 : f32
      %43 = vector.broadcast %35 : f32 to vector<8x128xf32>
      %44 = vector.broadcast %cst_20 : f32 to vector<8x128xf32>
      %45 = arith.select %42, %43, %44 : vector<8x128xi1>, vector<8x128xf32>
      %c0_21 = arith.constant 0 : index
      %c0_22 = arith.constant 0 : index
      %c0_23 = arith.constant 0 : index
      %c0_24 = arith.constant 0 : index
      %46 = vector.load %arg5[%c0_21, %c0_22, %c0_23, %c0_24] : memref<1x1x8x128xf32, #tpu.memory_space<vmem>>, vector<1x1x8x128xf32>
      %47 = vector.shape_cast %46 : vector<1x1x8x128xf32> to vector<8x128xf32>
      %48 = vector.shape_cast %45 : vector<8x128xf32> to vector<1x1x8x128xf32>
      tpu.vector_store %arg5[%c0_21, %c0_22, %c0_23, %c0_24], %48 {strides = array<i32>} : memref<1x1x8x128xf32, #tpu.memory_space<vmem>>, vector<1x1x8x128xf32>,
    } else {
    }
    return
  }
  func.func @transform_0(%arg0: i32, %arg1: i32, %arg2: i32) -> (i32, i32, i32) {
    %c1_i32 = arith.constant 1 : i32
    %0 = arith.muli %arg1, %c1_i32 : i32
    %1 = arith.addi %0, %arg2 : i32
    %c0_i32 = arith.constant 0 : i32
    %c0_i32_0 = arith.constant 0 : i32
    return %arg0, %c0_i32, %1 : i32, i32, i32
  }
  func.func @transform_1(%arg0: i32, %arg1: i32, %arg2: i32) -> (i32, i32, i32) {
    %c1_i32 = arith.constant 1 : i32
    %0 = arith.muli %arg1, %c1_i32 : i32
    %1 = arith.addi %0, %arg2 : i32
    %c0_i32 = arith.constant 0 : i32
    %c0_i32_0 = arith.constant 0 : i32
    return %arg0, %c0_i32, %1 : i32, i32, i32
  }
  func.func @transform_2(%arg0: i32, %arg1: i32, %arg2: i32) -> (i32, i32, i32, i32) {
    %c0_i32 = arith.constant 0 : i32
    %c0_i32_0 = arith.constant 0 : i32
    %c0_i32_1 = arith.constant 0 : i32
    return %arg0, %arg1, %c0_i32, %c0_i32_0 : i32, i32, i32, i32
  }
}

</mosaic_0001>

<llo_original>
// kernel: tpu_custom_call.1
$region0: #{tpu_custom_call.1}
  #allocation0 [shape = 'u32[]', space=smem, size = 0x4, offset = 0x4, fixed_abs, tag = 'smem constant byte address 0x4 - core index']
  #allocation1 [shape = 'u32[144,128]{1,0:T(1,128)}', space=vmem, size = 0x12000, scoped, tag = 'internal scratch']
  #allocation2 [shape = 'f32[1,256]{1,0:T(1,128)}', space=vmem, size = 0x400, scoped, tag = 'scratch operand']
  %s0 = inlined_call_operand.hbm [shape: f32[2,4,256], index: 0, kind: input, shape index: {}]
  %s1 = inlined_call_operand.hbm [shape: s32[2,1,256], index: 1, kind: input, shape index: {}]
  %s2 = inlined_call_operand.hbm [shape: f32[2,1,8,128], index: 2, kind: output, shape index: {}]
  %s3 = sld [smem:[#allocation0]]
  $region57: #{tpu_custom_call.1} parent=0
    _
  %s5 = ssub.s32 1, %s3
  %s6 = scalar_select 0, %s5, %s3
  $region1: #{tpu_custom_call.1} parent=0
    #allocation3 [shape = 'u8[8192]{0}', space=vmem, size = 0x2000, scoped, tag = 'input window, operand 0']
    #allocation4 [shape = 's32[2]{0}', space=sflag, size = 0x8, scoped, tag = 'scoped memory for tpu_custom_call.1']
    #allocation5 [shape = 's32[2]{0}', space=sflag, size = 0x8, scoped, tag = 'scoped memory for tpu_custom_call.1']
    #allocation6 [shape = 'u8[2048]{0}', space=vmem, size = 0x800, scoped, tag = 'input window, operand 1']
    #allocation7 [shape = 's32[2]{0}', space=sflag, size = 0x8, scoped, tag = 'scoped memory for tpu_custom_call.1']
    #allocation8 [shape = 'u8[8192]{0}', space=vmem, size = 0x2000, scoped, tag = 'output window, operand 0']
    %7 = vsyncpa [#allocation4], 0
    %s8 = scalar_lea.sflag [#allocation4], 1
    %9 = vsyncpa %s8, 0
    %10 = vsyncpa [#allocation7], 0
    %s11 = scalar_lea.sflag [#allocation7], 1
    %12 = vsyncpa %s11, 0
    %13 = vsyncpa [#allocation5], 0
    %s14 = scalar_lea.sflag [#allocation5], 1
    %15 = vsyncpa %s14, 0
    loop: start=0, step=1, limit=4
    $region2: #{tpu_custom_call.1} parent=1 // loop_pre_header
      _
    $region3: #{tpu_custom_call.1} parent=1 // loop_header
      %s17 = sphi 0, %s21
      %p18 = scmp.ge.s32.totalorder %s17, 4
      %s24 = sphi 0, %s43
      %s25 = sphi 0, %s39
      %s26 = sphi 0, %s35
      %s27 = sphi 0, %s24
      %s28 = sphi 0, %s25
      %s29 = sphi 0, %s26
      %s30 = sphi 0, %s27
      %s31 = sphi 0, %s28
      %s32 = sphi 0, %s29
      %s50 = sphi 0, %s52
      %s53 = sphi 0, %s50
      %s54 = sphi 0, %s53
      %s70 = sphi 0, %s54
      %s80 = sphi 0, %s82
      %s83 = sphi 0, %s80
      %s84 = sphi 0, %s83
      %s100 = sphi 0, %s84
      %s108 = sphi 0, %s110
      %s111 = sphi 0, %s108
      %s112 = sphi 0, %s111
      %s128 = sphi 0, %s112
    $region4: #{tpu_custom_call.1} parent=1 // loop_header_branch
      %20 = sbr.rel (%p18) target = $region8
    $region5: #{tpu_custom_call.1} parent=1 // loop_body
      %s22 = ssub.s32 %s17, 1
      %s23 = ssub.s32 %s17, 2
      %s33 = sadd.s32 1, %s26
      %p34 = scmp.ge.s32.totalorder %s33, 1
      %s35 = scalar_select %p34, 0, %s33
      %s36 = sadd.s32 1, %s25
      %s37 = scalar_select %p34, %s36, %s25
      %p38 = scmp.ge.s32.totalorder %s37, 1
      %s39 = scalar_select %p38, 0, %s37
      %s40 = sadd.s32 1, %s24
      %s41 = scalar_select %p38, %s40, %s24
      %p42 = scmp.ge.s32.totalorder %s41, 2
      %s43 = scalar_select %p42, 0, %s41
      %s44 = sadd.s32 %s25, %s26
      %s45 = sadd.s32 %s39, %s35
      %s46 = ssub.s32 %s24, %s43
      %s47 = ssub.s32 %s44, %s45
      %s48 = sor.u32 %s46, %s47
      %p49 = scmp.eq.s32.totalorder %s48, 0
      %s51 = sadd.s32 %s50, 1
      %s52 = scalar_select %p49, %s50, %s51
      %p55 = pneg %p49
      %p56 = scmp.eq.s32.totalorder %s17, 1
      %p57 = por %p55, %p56
      %p58 = scmp.ne.s32.totalorder %s50, %s53
      %p59 = scmp.eq.s32.totalorder %s17, 0
      %p60 = por %p58, %p59
      %p61 = scmp.ne.s32.totalorder %s50, %s53
      %p62 = scmp.eq.s32.totalorder %s22, 1
      %p63 = por %p61, %p62
      %p64 = scmp.ne.s32.totalorder %s53, %s54
      %p65 = scmp.eq.s32.totalorder %s22, 0
      %p66 = por %p64, %p65
      %p67 = scmp.ne.s32.totalorder %s53, %s54
      %p68 = scmp.eq.s32.totalorder %s23, 1
      %p69 = por %p67, %p68
      %p71 = scmp.ne.s32.totalorder %s54, %s70
      %p72 = scmp.eq.s32.totalorder %s23, 0
      %p73 = por %p71, %p72
      %s74 = sadd.s32 %s25, %s26
      %s75 = sadd.s32 %s39, %s35
      %s76 = ssub.s32 %s24, %s43
      %s77 = ssub.s32 %s74, %s75
      %s78 = sor.u32 %s76, %s77
      %p79 = scmp.eq.s32.totalorder %s78, 0
      %s81 = sadd.s32 %s80, 1
      %s82 = scalar_select %p79, %s80, %s81
      %p85 = pneg %p79
      %p86 = scmp.eq.s32.totalorder %s17, 1
      %p87 = por %p85, %p86
      %p88 = scmp.ne.s32.totalorder %s80, %s83
      %p89 = scmp.eq.s32.totalorder %s17, 0
      %p90 = por %p88, %p89
      %p91 = scmp.ne.s32.totalorder %s80, %s83
      %p92 = scmp.eq.s32.totalorder %s22, 1
      %p93 = por %p91, %p92
      %p94 = scmp.ne.s32.totalorder %s83, %s84
      %p95 = scmp.eq.s32.totalorder %s22, 0
      %p96 = por %p94, %p95
      %p97 = scmp.ne.s32.totalorder %s83, %s84
      %p98 = scmp.eq.s32.totalorder %s23, 1
      %p99 = por %p97, %p98
      %p101 = scmp.ne.s32.totalorder %s84, %s100
      %p102 = scmp.eq.s32.totalorder %s23, 0
      %p103 = por %p101, %p102
      %s104 = ssub.s32 %s24, %s43
      %s105 = ssub.s32 %s25, %s39
      %s106 = sor.u32 %s104, %s105
      %p107 = scmp.eq.s32.totalorder %s106, 0
      %s109 = sadd.s32 %s108, 1
      %s110 = scalar_select %p107, %s108, %s109
      %p113 = pneg %p107
      %p114 = scmp.eq.s32.totalorder %s17, 1
      %p115 = por %p113, %p114
      %p116 = scmp.ne.s32.totalorder %s108, %s111
      %p117 = scmp.eq.s32.totalorder %s17, 0
      %p118 = por %p116, %p117
      %p119 = scmp.ne.s32.totalorder %s108, %s111
      %p120 = scmp.eq.s32.totalorder %s22, 1
      %p121 = por %p119, %p120
      %p122 = scmp.ne.s32.totalorder %s111, %s112
      %p123 = scmp.eq.s32.totalorder %s22, 0
      %p124 = por %p122, %p123
      %p125 = scmp.ne.s32.totalorder %s111, %s112
      %p126 = scmp.eq.s32.totalorder %s23, 1
      %p127 = por %p125, %p126
      %p129 = scmp.ne.s32.totalorder %s112, %s128
      %p130 = scmp.eq.s32.totalorder %s23, 0
      %p131 = por %p129, %p130
      %p132 = scmp.le.s32.totalorder 1, %s17
      %p133 = scmp.lt.s32.totalorder %s17, 3
      %p134 = pnand %p132, %p133
      %p135 = pneg %p134
      // Predicated region
      $region9: #{tpu_custom_call.1} parent=5 // pred_check
        _
      $region10: #{tpu_custom_call.1} parent=5 // pred_check_branch
        %137 = sbr.rel (%p134) target = $region12
      $region11: #{tpu_custom_call.1} parent=5 // pred_region
        %s138 = ssub.s32 %s17, 1
      $region12: #{tpu_custom_call.1} parent=5 // pred_fallthru
        _
      %p139 = scmp.lt.s32.totalorder %s17, 2
      // Predicated region
      $region13: #{tpu_custom_call.1} parent=5 // pred_check
        %p140 = pneg %p139
      $region14: #{tpu_custom_call.1} parent=5 // pred_check_branch
        %142 = sbr.rel (%p140) target = $region16
      $region15: #{tpu_custom_call.1} parent=5 // pred_region
        // Predicated region
        $region17: #{tpu_custom_call.1} parent=15 // pred_check
          %p143 = pneg %p60
        $region18: #{tpu_custom_call.1} parent=15 // pred_check_branch
          %145 = sbr.rel (%p143) target = $region20
        $region19: #{tpu_custom_call.1} parent=15 // pred_region
          %s146 = sand.u32 %s50, 1
          %s147 = scalar_lea.sflag [#allocation4], %s146
          %s148 = sand.u32 %s50, 1
          %s149 = smul.addr %s148, 8
          %s150 = scalar_lea.vmem [#allocation3], %s149
          %s151 = sadd.s32 %s25, %s26
          %s152 = smul.u32 2, %s151
          %s154 = ssub.s32 128, 128
          %155 = vsyncadd %s147, %s154
          %s156 = smul.addr %s24, 2
          %s157 = sadd.s32 %s152, %s156
          %s158 = smul.addr %s157, 64
          %s159 = scalar_lea.hbm %s0, %s158
          %s161 = sshll.u32 %s150, 4
          %s162 = int_to_ptr.vmem [resolvable:$true] %s161
          %164 = dma.hbm_to_vmem [thread:$0]  %s159, 128, %s162, %s147
        $region20: #{tpu_custom_call.1} parent=15 // pred_fallthru
          _
        // Predicated region
        $region21: #{tpu_custom_call.1} parent=15 // pred_check
          %p165 = pneg %p90
        $region22: #{tpu_custom_call.1} parent=15 // pred_check_branch
          %167 = sbr.rel (%p165) target = $region24
        $region23: #{tpu_custom_call.1} parent=15 // pred_region
          %s168 = sand.u32 %s80, 1
          %s169 = scalar_lea.sflag [#allocation7], %s168
          %s170 = sand.u32 %s80, 1
          %s171 = smul.addr %s170, 2
          %s172 = scalar_lea.vmem [#allocation6], %s171
          %s173 = sadd.s32 %s25, %s26
          %s174 = smul.u32 2, %s173
          %s176 = ssub.s32 32, 32
          %177 = vsyncadd %s169, %s176
          %s178 = smul.addr %s24, 2
          %s179 = sadd.s32 %s174, %s178
          %s180 = smul.addr %s179, 16
          %s181 = scalar_lea.hbm %s1, %s180
          %s183 = sshll.u32 %s172, 4
          %s184 = int_to_ptr.vmem [resolvable:$true] %s183
          %186 = dma.hbm_to_vmem [thread:$0]  %s181, 32, %s184, %s169
        $region24: #{tpu_custom_call.1} parent=15 // pred_fallthru
          _
      $region16: #{tpu_custom_call.1} parent=5 // pred_fallthru
        _
      %p187 = scmp.le.s32.totalorder 1, %s17
      %p188 = scmp.lt.s32.totalorder %s17, 3
      %p189 = pnand %p187, %p188
      %p190 = pneg %p189
      // Predicated region
      $region25: #{tpu_custom_call.1} parent=5 // pred_check
        _
      $region26: #{tpu_custom_call.1} parent=5 // pred_check_branch
        %192 = sbr.rel (%p189) target = $region28
      $region27: #{tpu_custom_call.1} parent=5 // pred_region
        %s193 = ssub.s32 %s17, 1
        %s194 = sand.u32 %s53, 1
        %s195 = scalar_lea.sflag [#allocation4], %s194
        %s196 = sand.u32 %s53, 1
        %s197 = smul.addr %s196, 8
        %s198 = scalar_lea.vmem [#allocation3], %s197
        // Predicated region
        $region29: #{tpu_custom_call.1} parent=27 // pred_check
          %p199 = pneg %p66
        $region30: #{tpu_custom_call.1} parent=27 // pred_check_branch
          %201 = sbr.rel (%p199) target = $region32
        $region31: #{tpu_custom_call.1} parent=27 // pred_region
          %202 = dma.done %s195, 128
        $region32: #{tpu_custom_call.1} parent=27 // pred_fallthru
          _
        %s203 = sand.u32 %s83, 1
        %s204 = scalar_lea.sflag [#allocation7], %s203
        %s205 = sand.u32 %s83, 1
        %s206 = smul.addr %s205, 2
        %s207 = scalar_lea.vmem [#allocation6], %s206
        // Predicated region
        $region33: #{tpu_custom_call.1} parent=27 // pred_check
          %p208 = pneg %p96
        $region34: #{tpu_custom_call.1} parent=27 // pred_check_branch
          %210 = sbr.rel (%p208) target = $region36
        $region35: #{tpu_custom_call.1} parent=27 // pred_region
          %211 = dma.done %s204, 32
        $region36: #{tpu_custom_call.1} parent=27 // pred_fallthru
          _
        %s212 = sand.u32 %s53, 1
        %s213 = scalar_lea.sflag [#allocation4], %s212
        %s214 = sand.u32 %s53, 1
        %s215 = smul.addr %s214, 8
        %s216 = scalar_lea.vmem [#allocation3], %s215
        %p217 = pneg %p66
        %p218 = pneg %p63
        %s219 = sand.u32 %s83, 1
        %s220 = scalar_lea.sflag [#allocation7], %s219
        %s221 = sand.u32 %s83, 1
        %s222 = smul.addr %s221, 2
        %s223 = scalar_lea.vmem [#allocation6], %s222
        %p224 = pneg %p96
        %p225 = pneg %p93
        %p226 = pneg %p124
        %p227 = pneg %p121
        %s228 = sand.u32 %s111, 1
        %s229 = scalar_lea.sflag [#allocation5], %s228
        %s230 = sand.u32 %s111, 1
        %s231 = smul.addr %s230, 8
        %s232 = scalar_lea.vmem [#allocation8], %s231
        %s233 = sadd.s32 %s28, %s29
        %s234 = smul.u32 2, %s233
        %s235 = sadd.s32 %s28, %s29
        %s236 = smul.u32 2, %s235
        %p237 = scmp.eq.s32.totalorder %s29, 0
        // Predicated region
        $region37: #{tpu_custom_call.1} parent=27 // pred_check
          %p238 = pneg %p237
        $region38: #{tpu_custom_call.1} parent=27 // pred_check_branch
          %240 = sbr.rel (%p238) target = $region40
        $region39: #{tpu_custom_call.1} parent=27 // pred_region
          %v241 = vlaneseq
          %vm242 = vcmp.ge.s32.totalorder %v241, 0
          %vm243 = vcmp.lt.s32.totalorder %v241, 256
          %vm244 = vmand %vm242, %vm243
          %245 = vst.msk [vmem:[#allocation2] sm:$0x3] %vm244, 0.0
        $region40: #{tpu_custom_call.1} parent=27 // pred_fallthru
          _
        %v246 = vld [vmem:[%s198] sm:$0xff]
        %v247 = vld [vmem:[%s207] sm:$0x3]
        %v249 = vcombine.high %v246, %v246
        %vm251 = vcmask 1043456
        %v252 = vsel %vm251, %v246, -inf
        %v253 = vrot.slane %v252, 4
        %v254 = vmax.f32 %v252, %v253
        %v255 = vrot.slane %v254, 2
        %v256 = vmax.f32 %v254, %v255
        %v257 = vrot.slane %v256, 1
        %v258 = vmax.f32 %v256, %v257
        %v259 = vsel %vm251, %v249, -inf
        %v260 = vrot.slane %v259, 4
        %v261 = vmax.f32 %v259, %v260
        %v262 = vrot.slane %v261, 2
        %v263 = vmax.f32 %v261, %v262
        %v264 = vrot.slane %v263, 1
        %v265 = vmax.f32 %v263, %v264
        %v268 = vcombine.low %v258, %v265
        %v270 = vsub.f32 %v246, %v268
        %v271 = vmul.f32 %v270, 1.442695
        %v272 = vpow.pop %v271
        %v274 = vcombine.high %v272, %v272
        %v276 = vsel %vm251, %v272, 0.0
        %v277 = vrot.slane %v276, 4
        %v278 = vadd.f32 %v276, %v277
        %v279 = vrot.slane %v278, 2
        %v280 = vadd.f32 %v278, %v279
        %v281 = vrot.slane %v280, 1
        %v282 = vadd.f32 %v280, %v281
        %v283 = vsel %vm251, %v274, 0.0
        %v284 = vrot.slane %v283, 4
        %v285 = vadd.f32 %v283, %v284
        %v286 = vrot.slane %v285, 2
        %v287 = vadd.f32 %v285, %v286
        %v288 = vrot.slane %v287, 1
        %v289 = vadd.f32 %v287, %v288
        %v290 = vlog2.pop %v282
        %v291 = vmul.f32 %v290, 0.6931472
        %v292 = vlog2.pop %v289
        %v293 = vmul.f32 %v292, 0.6931472
        %v294 = vadd.f32 %v258, %v291
        %v295 = vadd.f32 %v265, %v293
        %v296 = vlaneseq
        %v297 = vshrl.u32 %v296, 7
        %v298 = vlaneseq
        %v299 = vshrl.u32 %v298, 7
        %v300 = vsub.s32 0, %v299
        %v301 = vrot.slane %v247, %v300
        %v302 = vlaneseq
        %v303 = vshrl.u32 %v302, 7
        %v304 = vsub.s32 1, %v303
        %v305 = vrot.slane %v247, %v304
        %vm306 = vcmp.eq.s32.totalorder %v297, %v301
        %vm307 = vcmp.eq.s32.totalorder %v297, %v305
        %v308 = vsel %vm306, %v246, 0.0
        %v309 = vsel %vm307, %v249, 0.0
        %v310 = vsel %vm251, %v308, 0.0
        %v311 = vrot.slane %v310, 4
        %v312 = vadd.f32 %v310, %v311
        %v313 = vrot.slane %v312, 2
        %v314 = vadd.f32 %v312, %v313
        %v315 = vrot.slane %v314, 1
        %v316 = vadd.f32 %v314, %v315
        %v317 = vsel %vm251, %v309, 0.0
        %v318 = vrot.slane %v317, 4
        %v319 = vadd.f32 %v317, %v318
        %v320 = vrot.slane %v319, 2
        %v321 = vadd.f32 %v319, %v320
        %v322 = vrot.slane %v321, 1
        %v323 = vadd.f32 %v321, %v322
        %v324 = vld [vmem:[#allocation2] sm:$0x3]
        %v325 = vsub.f32 %v294, %v316
        %v326 = vsub.f32 %v295, %v323
        %v329 = vcombine.low %v325, %v326
        %v331 = vunpack.c.l.s4 1966171168
        %v332 = vunpack.c.0.s8 %v331
        %v333 = vlaneseq
        %v334 = vshrl.u32 %v333, 7
        %v335 = vsub.s32 %v332, %v334
        %v336 = vrot.slane %v329, %v335
        %v338 = vunpack.c.l.s4 1966171168
        %v339 = vunpack.c.0.s8 %v338
        %v340 = vlaneseq
        %v341 = vshrl.u32 %v340, 7
        %v342 = vsub.s32 %v339, %v341
        %v343 = vrot.slane %v336, %v342
        %v345 = vadd.f32 %v324, %v343
        %v346 = vlaneseq
        %vm347 = vcmp.ge.s32.totalorder %v346, 0
        %vm348 = vcmp.lt.s32.totalorder %v346, 256
        %vm349 = vmand %vm347, %vm348
        %350 = vst.msk [vmem:[#allocation2] sm:$0x3] %vm349, %v345
        // Predicated region
        $region41: #{tpu_custom_call.1} parent=27 // pred_check
          %p351 = pneg %p237
        $region42: #{tpu_custom_call.1} parent=27 // pred_check_branch
          %353 = sbr.rel (%p351) target = $region44
        $region43: #{tpu_custom_call.1} parent=27 // pred_region
          %v354 = vld [vmem:[#allocation2] sm:$0x3]
          %v356 = vlaneseq
          %v357 = vshrl.u32 %v356, 7
          %v358 = vsub.s32 0, %v357
          %v359 = vrot.slane %v354, %v358
          %v360 = vlaneseq
          %v361 = vshrl.u32 %v360, 7
          %v362 = vsub.s32 1, %v361
          %v363 = vrot.slane %v354, %v362
          %vm366 = vcmask 1040384
          %v367 = vsel %vm366, %v359, 0.0
          %v368 = vsel %vm366, %v363, 0.0
          %v369 = vadd.f32 %v367, %v368
          %370 = vadd.xlane.f32.xlu0 %v369
          %v371 = vpop.xlane.xlu0 %370
          %v372 = vrot.slane %v371, 4
          %v373 = vadd.f32 %v371, %v372
          %v374 = vrot.slane %v373, 2
          %v375 = vadd.f32 %v373, %v374
          %v376 = vrot.slane %v375, 1
          %v377 = vadd.f32 %v375, %v376
          %s378 = vtos %v377
          %v379 = vlaneseq
          %v380 = vand.u32 %v379, 127
          %vm381 = vcmp.eq.s32.totalorder %v297, 0
          %vm382 = vcmp.eq.s32.totalorder %v380, 0
          %vm383 = vmand %vm381, %vm382
          %v384 = vstv %s378
          %v385 = vsel %vm383, %v384, 0.0
          %386 = vst [vmem:[%s232] sm:$0xff] %v385
        $region44: #{tpu_custom_call.1} parent=27 // pred_fallthru
          _
        %s387 = sand.u32 %s111, 1
        %s388 = scalar_lea.sflag [#allocation5], %s387
        %s389 = sand.u32 %s111, 1
        %s390 = smul.addr %s389, 8
        %s391 = scalar_lea.vmem [#allocation8], %s390
        // Predicated region
        $region45: #{tpu_custom_call.1} parent=27 // pred_check
          %p392 = pneg %p121
        $region46: #{tpu_custom_call.1} parent=27 // pred_check_branch
          %394 = sbr.rel (%p392) target = $region48
        $region47: #{tpu_custom_call.1} parent=27 // pred_region
          %s396 = ssub.s32 128, 128
          %397 = vsyncadd %s388, %s396
          %s398 = sadd.s32 %s28, %s27
          %s399 = smul.addr %s398, 128
          %s400 = scalar_lea.hbm %s2, %s399
          %s402 = sshll.u32 %s391, 4
          %s403 = int_to_ptr.vmem [resolvable:$true] %s402
          %405 = dma.vmem_to_hbm [thread:$0]  %s403, 128, %s400, %s388
        $region48: #{tpu_custom_call.1} parent=27 // pred_fallthru
          _
      $region28: #{tpu_custom_call.1} parent=5 // pred_fallthru
        _
      %p406 = scmp.le.s32.totalorder 2, %s17
      // Predicated region
      $region49: #{tpu_custom_call.1} parent=5 // pred_check
        %p407 = pneg %p406
      $region50: #{tpu_custom_call.1} parent=5 // pred_check_branch
        %409 = sbr.rel (%p407) target = $region52
      $region51: #{tpu_custom_call.1} parent=5 // pred_region
        %s410 = ssub.s32 %s17, 2
        // Predicated region
        $region53: #{tpu_custom_call.1} parent=51 // pred_check
          %p411 = pneg %p127
        $region54: #{tpu_custom_call.1} parent=51 // pred_check_branch
          %413 = sbr.rel (%p411) target = $region56
        $region55: #{tpu_custom_call.1} parent=51 // pred_region
          %s414 = sand.u32 %s112, 1
          %s415 = scalar_lea.sflag [#allocation5], %s414
          %s416 = sand.u32 %s112, 1
          %s417 = smul.addr %s416, 8
          %s418 = scalar_lea.vmem [#allocation8], %s417
          %419 = dma.done %s415, 128
        $region56: #{tpu_custom_call.1} parent=51 // pred_fallthru
          _
      $region52: #{tpu_custom_call.1} parent=5 // pred_fallthru
        _
    $region6: #{tpu_custom_call.1} parent=1 // loop_footer
      %s21 = sadd.s32 1, %s17
    $region7: #{tpu_custom_call.1} parent=1 // loop_footer_branch
      %16 = sbr.rel target = $region3
    $region8: #{tpu_custom_call.1} parent=1 // loop_exit
      _
    %420 = vsyncpa [#allocation4], 1
    %s421 = scalar_lea.sflag [#allocation4], 1
    %422 = vsyncpa %s421, 1
    %423 = vsyncpa [#allocation7], 1
    %s424 = scalar_lea.sflag [#allocation7], 1
    %425 = vsyncpa %s424, 1
    %426 = vsyncpa [#allocation5], 1
    %s427 = scalar_lea.sflag [#allocation5], 1
    %428 = vsyncpa %s427, 1

</llo_original>
